<compile_context>
chip_gen: v5e
topology: v5e:2x2
jax: 0.10.0
libtpu: 0.0.40
codegen_flags: <defaults>
</compile_context>

<pallas_src>
import functools

import jax
import jax.numpy as jnp
from jax.experimental import pallas as pl
from jax.experimental.pallas import tpu as pltpu


# ---------------------------------------------------------------------------
# Small helpers
# ---------------------------------------------------------------------------
def _round_up(a, m):
    return ((a + m - 1) // m) * m


def _vmem_capacity_bytes():
    try:
        return int(pltpu.get_tpu_info().vmem_capacity_bytes)
    except Exception:
        return 64 * 1024 * 1024  # conservative: v7x physical VMEM


def _gate_dtype():
    # bf16 epilogue on v6e/v7x (native bf16 VALU/EUP); f32 on v5e.
    try:
        kind = jax.devices()[0].device_kind.lower()
        if "v5" in kind:
            return jnp.float32
    except Exception:
        pass
    return jnp.bfloat16


def _const_spec(shape):
    """Resident operand: constant index_map + single buffer."""
    idx = lambda *_: (0,) * len(shape)
    try:
        return pl.BlockSpec(shape, idx, pipeline_mode=pl.Buffered(1))
    except Exception:  # older jax without pipeline_mode kwarg
        return pl.BlockSpec(shape, idx)


def _choose_tm(B, Dx, size, vmem_cap):
    """Adaptive row tile: big enough to amortize per-step overhead, small
    enough to fit VMEM, and >=2 blocks for moderate B (v7x megacore)."""
    S3 = 3 * size
    resident = (Dx + size) * S3 * 2 + 2 * S3 * 4          # bf16 weights + ln params
    per_row = 2 * 2 * (Dx + 2 * size)                     # dbl-buffered bf16 x,h,out
    budget = int(0.5 * vmem_cap) - resident
    cap = max(8, min(1024, budget // max(per_row, 1)))
    cap = max(8, (cap // 8) * 8)
    if B <= 64:
        return min(cap, _round_up(B, 8))
    n_blocks = max(2, pl.cdiv(B, cap))
    tm = _round_up(pl.cdiv(B, n_blocks), 8)
    return min(tm, cap)


def _layernorm_affine(parts, g, b, eps, n):
    """One-pass LN: var = E[x^2] - mean^2; gamma folded into the rsqrt scale."""
    inv_n = 1.0 / float(n)
    mean = jnp.sum(parts, axis=-1, keepdims=True) * inv_n
    meansq = jnp.sum(parts * parts, axis=-1, keepdims=True) * inv_n
    var = meansq - mean * mean
    scale = jax.lax.rsqrt(var + eps) * g                  # (TM,1)*(1,3S)
    return parts * scale + (b - mean * scale)


# ---------------------------------------------------------------------------
# Kernels
# ---------------------------------------------------------------------------
def _gru_step_kernel(x_ref, h_ref, wx_ref, wh_ref, g_ref, b_ref, o_ref, *,
                     size, eps, update_bias, norm, gate_dtype):
    """Single GRU step over a (TM, *) row tile.  x/h bf16, f32 accumulate."""
    h_in = h_ref[...]                                     # (TM, S) bf16
    parts = jnp.dot(x_ref[...], wx_ref[...], preferred_element_type=jnp.float32)
    parts = parts + jnp.dot(h_in, wh_ref[...], preferred_element_type=jnp.float32)
    if norm:
        parts = _layernorm_affine(parts, g_ref[...], b_ref[...], eps, 3 * size)
    parts = parts.astype(gate_dtype)
    reset = jax.nn.sigmoid(parts[:, :size])
    cand = jnp.tanh(reset * parts[:, size:2 * size])      # act = tanh
    update = jax.nn.sigmoid(parts[:, 2 * size:] + update_bias)
    h_prev = h_in.astype(gate_dtype)
    o_ref[...] = (update * cand + (1.0 - update) * h_prev).astype(o_ref.dtype)


def _gru_scan_kernel(x_ref, h0_ref, wx_ref, wh_ref, g_ref, b_ref, o_ref,
                     h_scr, *, size, eps, update_bias, norm, gate_dtype):
    """Fused recurrence: grid=(T,), h carried in a f32 VMEM scratch."""
    t = pl.program_id(0)

    @pl.when(t == 0)
    def _():
        h_scr[...] = h0_ref[...].astype(jnp.float32)

    h = h_scr[...]                                        # (B, S) f32 carry
    x = x_ref[0]                                          # (B, Dx) bf16
    parts = jnp.dot(x, wx_ref[...], preferred_element_type=jnp.float32)
    parts = parts + jnp.dot(h.astype(jnp.bfloat16), wh_ref[...],
                            preferred_element_type=jnp.float32)
    if norm:
        parts = _layernorm_affine(parts, g_ref[...], b_ref[...], eps, 3 * size)
    parts = parts.astype(gate_dtype)
    reset = jax.nn.sigmoid(parts[:, :size])
    cand = jnp.tanh(reset * parts[:, size:2 * size])
    update = jax.nn.sigmoid(parts[:, 2 * size:] + update_bias)
    # Blend and carry in f32 to limit drift over long rollouts.
    u32 = update.astype(jnp.float32)
    h_new = u32 * cand.astype(jnp.float32) + (1.0 - u32) * h
    h_scr[...] = h_new
    o_ref[0] = h_new.astype(o_ref.dtype)


# ---------------------------------------------------------------------------
# pallas_call wrappers
# ---------------------------------------------------------------------------
def _gru_forward(x, h, w_x, w_h, gamma, beta, *, size, norm, update_bias,
                 eps=1e-3):
    B, Dx = x.shape
    S3 = 3 * size
    vmem_cap = _vmem_capacity_bytes()
    gate_dtype = _gate_dtype()

    TM = _choose_tm(B, Dx, size, vmem_cap)
    Bp = pl.cdiv(B, TM) * TM
    if Bp != B:
        # Zero rows are safe: bias-free matmul -> LN -> beta -> finite; sliced off.
        x = jnp.pad(x, ((0, Bp - B), (0, 0)))
        h = jnp.pad(h, ((0, Bp - B), (0, 0)))

    flops = 2 * Bp * (Dx + size) * S3
    bytes_accessed = (Bp * (Dx + 2 * size) * 2            # bf16 x, h, out
                      + (Dx + size) * S3 * 2              # bf16 weights
                      + 2 * S3 * 4)                       # gamma/beta
    cost = pl.CostEstimate(flops=flops, transcendentals=3 * Bp * size,
                           bytes_accessed=bytes_accessed)

    vmem_need = (2 * TM * (Dx + 2 * size) * 2             # dbl-buffered bf16 tiles
                 + (Dx + size) * S3 * 2 + 2 * S3 * 4)     # resident weights/params
    vmem_limit = int(min(int(0.85 * vmem_cap), max(32 << 20, 2 * vmem_need)))

    out = pl.pallas_call(
        functools.partial(_gru_step_kernel, size=size, eps=eps,
                          update_bias=update_bias, norm=norm,
                          gate_dtype=gate_dtype),
        out_shape=jax.ShapeDtypeStruct((Bp, size), jnp.bfloat16),
        grid_spec=pltpu.PrefetchScalarGridSpec(
            num_scalar_prefetch=0,
            grid=(Bp // TM,),
            in_specs=[
                pl.BlockSpec((TM, Dx), lambda i: (i, 0)),      # input rows
                pl.BlockSpec((TM, size), lambda i: (i, 0)),    # state rows
                _const_spec((Dx, S3)),                         # W_x (resident, 1 buf)
                _const_spec((size, S3)),                       # W_h (resident, 1 buf)
                _const_spec((1, S3)),                          # LN gamma
                _const_spec((1, S3)),                          # LN beta
            ],
            out_specs=pl.BlockSpec((TM, size), lambda i: (i, 0)),
        ),
        compiler_params=pltpu.CompilerParams(
            dimension_semantics=("parallel",),
            vmem_limit_bytes=vmem_limit),
        cost_estimate=cost,
    )(x, h, w_x, w_h, gamma, beta)

    return out[:B] if Bp != B else out


def _gru_scan_forward(xs, h0, w_x, w_h, gamma, beta, *, size, norm,
                      update_bias, eps=1e-3):
    T, B, Dx = xs.shape
    S3 = 3 * size
    vmem_cap = _vmem_capacity_bytes()
    gate_dtype = _gate_dtype()

    Bp = _round_up(B, 8)
    if Bp != B:
        xs = jnp.pad(xs, ((0, 0), (0, Bp - B), (0, 0)))
        h0 = jnp.pad(h0, ((0, Bp - B), (0, 0)))

    flops = 2 * T * Bp * (Dx + size) * S3
    bytes_accessed = (T * Bp * Dx * 2 + Bp * size * 2 + T * Bp * size * 2
                      + (Dx + size) * S3 * 2 + 2 * S3 * 4)
    cost = pl.CostEstimate(flops=flops, transcendentals=3 * T * Bp * size,
                           bytes_accessed=bytes_accessed)

    vmem_need = (2 * Bp * Dx * 2 + 2 * Bp * size * 2       # x in / out (dbl-buffered)
                 + Bp * size * 2                           # h0 (single buffer)
                 + (Dx + size) * S3 * 2 + 2 * S3 * 4       # weights / LN params
                 + Bp * size * 4)                          # f32 carry scratch
    vmem_limit = int(min(int(0.85 * vmem_cap), max(32 << 20, 2 * vmem_need)))

    out = pl.pallas_call(
        functools.partial(_gru_scan_kernel, size=size, eps=eps,
                          update_bias=update_bias, norm=norm,
                          gate_dtype=gate_dtype),
        out_shape=jax.ShapeDtypeStruct((T, Bp, size), jnp.bfloat16),
        grid_spec=pltpu.PrefetchScalarGridSpec(
            num_scalar_prefetch=0,
            grid=(T,),
            in_specs=[
                pl.BlockSpec((1, Bp, Dx), lambda t: (t, 0, 0)),  # x_t streamed
                _const_spec((Bp, size)),                         # h0 (resident)
                _const_spec((Dx, S3)),                           # W_x
                _const_spec((size, S3)),                         # W_h
                _const_spec((1, S3)),                            # LN gamma
                _const_spec((1, S3)),                            # LN beta
            ],
            out_specs=pl.BlockSpec((1, Bp, size), lambda t: (t, 0, 0)),
            scratch_shapes=[pltpu.VMEM((Bp, size), jnp.float32)],  # h carry
        ),
        compiler_params=pltpu.CompilerParams(
            dimension_semantics=("arbitrary",),   # sequential recurrence
            vmem_limit_bytes=vmem_limit),
        cost_estimate=cost,
    )(xs, h0, w_x, w_h, gamma, beta)

    return out[:, :B] if Bp != B else out


# ---------------------------------------------------------------------------
# Module wrapper
# ---------------------------------------------------------------------------
class GRUCellPallas:
    """Mirror of dreamer GRUCell(inp_size, size, norm=True, act=tanh, update_bias=-1)."""

    def __init__(self, inp_size, size, norm=True, update_bias=-1.0, key=None):
        self._inp_size = inp_size
        self._size = size
        self._norm = norm
        self._update_bias = float(update_bias)
        if size % 128 != 0:
            # TODO(synk): pad the gate width to a multiple of 128 and mask the
            # LN stats; non-multiple sizes still work but pay lane relayouts.
            pass
        key = jax.random.PRNGKey(0) if key is None else key
        fan_in = inp_size + size
        # Deterministic synthetic init; PyTorch Linear layout (3*size, inp+size).
        w = (jax.random.uniform(key, (3 * size, fan_in), jnp.float32,
                                minval=-1.0, maxval=1.0)
             / jnp.sqrt(float(fan_in)))
        w_t = jnp.transpose(w)                   # (inp+size, 3*size) == W^T
        # Pre-split (no HBM cat of [inputs, state]); bf16 weights for the MXU.
        self.w_x = w_t[:inp_size].astype(jnp.bfloat16)
        self.w_h = w_t[inp_size:].astype(jnp.bfloat16)
        self.gamma = jnp.ones((1, 3 * size), jnp.float32)
        self.beta = jnp.zeros((1, 3 * size), jnp.float32)
        # TODO(synk): only act=tanh is supported (the dreamer default).

    @property
    def state_size(self):
        return self._size

    def __call__(self, inputs, state):
        h = state[0]
        batch_shape = inputs.shape[:-1]
        x2 = inputs.reshape(-1, self._inp_size)
        h2 = h.reshape(-1, self._size)
        # Upstream should already supply bf16 activations; cast only if needed.
        if x2.dtype != jnp.bfloat16:
            x2 = x2.astype(jnp.bfloat16)
        if h2.dtype != jnp.bfloat16:
            h2 = h2.astype(jnp.bfloat16)
        out = _gru_forward(x2, h2, self.w_x, self.w_h, self.gamma, self.beta,
                           size=self._size, norm=self._norm,
                           update_bias=self._update_bias)
        out = out.reshape(batch_shape + (self._size,))
        return out, [out]

    def scan(self, inputs, state):
        """Fused recurrence over a whole sequence: inputs (T, ..., inp)."""
        h = state[0]
        T = inputs.shape[0]
        batch_shape = inputs.shape[1:-1]
        xs = inputs.reshape(T, -1, self._inp_size)
        h2 = h.reshape(-1, self._size)
        if xs.dtype != jnp.bfloat16:
            xs = xs.astype(jnp.bfloat16)
        if h2.dtype != jnp.bfloat16:
            h2 = h2.astype(jnp.bfloat16)
        outs = _gru_scan_forward(xs, h2, self.w_x, self.w_h, self.gamma,
                                 self.beta, size=self._size, norm=self._norm,
                                 update_bias=self._update_bias)
        outs = outs.reshape((T,) + batch_shape + (self._size,))
        return outs, [outs[-1]]


# ---------------------------------------------------------------------------
# Demo / correctness check
# ---------------------------------------------------------------------------
if __name__ == "__main__":
    key = jax.random.PRNGKey(0)
    k_in, k_h, k_w, k_seq = jax.random.split(key, 4)
    B, INP, SIZE, T = 8, 64, 128, 8
    inputs = jax.random.normal(k_in, (B, INP), jnp.float32).astype(jnp.bfloat16)
    h0 = jax.random.normal(k_h, (B, SIZE), jnp.float32).astype(jnp.bfloat16)
    xs = jax.random.normal(k_seq, (T, B, INP), jnp.float32).astype(jnp.bfloat16)

    cell = GRUCellPallas(INP, SIZE, norm=True, update_bias=-1.0, key=k_w)

    # Pure-JAX f32 reference (same bf16 weights / bf16 inputs).
    wx_f = cell.w_x.astype(jnp.float32)
    wh_f = cell.w_h.astype(jnp.float32)

    def ref_step(x, h):
        xf = x.astype(jnp.float32)
        hf = h.astype(jnp.float32)
        parts = xf @ wx_f + hf @ wh_f
        mean = parts.mean(-1, keepdims=True)
        var = jnp.square(parts - mean).mean(-1, keepdims=True)
        parts = (parts - mean) * jax.lax.rsqrt(var + 1e-3) * cell.gamma + cell.beta
        r = jax.nn.sigmoid(parts[:, :SIZE])
        c = jnp.tanh(r * parts[:, SIZE:2 * SIZE])
        u = jax.nn.sigmoid(parts[:, 2 * SIZE:] - 1.0)
        return u * c + (1.0 - u) * hf

    # --- single-step kernel ---
    step = jax.jit(lambda x, h: cell(x, [h]))
    out, new_state = step(inputs, h0)
    out = jax.block_until_ready(out)
    ref = ref_step(inputs, h0)
    assert out.shape == (B, SIZE), out.shape
    assert new_state[0].shape == (B, SIZE)
    out_f = out.astype(jnp.float32)
    assert bool(jnp.all(jnp.isfinite(out_f)))
    err = float(jnp.max(jnp.abs(out_f - ref)))
    assert err < 0.1, f"single-step mismatch vs reference: {err}"

    # --- fused recurrence kernel ---
    scan_fn = jax.jit(lambda s, h: cell.scan(s, [h]))
    outs, final_state = scan_fn(xs, h0)
    outs = jax.block_until_ready(outs)
    h_ref = h0
    refs = []
    for t in range(T):
        h_ref = ref_step(xs[t], h_ref)
        refs.append(h_ref)
    refs = jnp.stack(refs)
    assert outs.shape == (T, B, SIZE), outs.shape
    assert final_state[0].shape == (B, SIZE)
    outs_f = outs.astype(jnp.float32)
    assert bool(jnp.all(jnp.isfinite(outs_f)))
    err2 = float(jnp.max(jnp.abs(outs_f - refs)))
    assert err2 < 0.1, f"scan mismatch vs reference: {err2}"

    print("KERNEL_OK")
</pallas_src>

<mosaic_0001>
module attributes {stable_mosaic.version = 11 : i64} {
  func.func @_gru_step_kernel(%arg0: i32, %arg1: memref<8x64xbf16, #tpu.memory_space<vmem>>, %arg2: memref<8x128xbf16, #tpu.memory_space<vmem>>, %arg3: memref<64x384xbf16, #tpu.memory_space<vmem>>, %arg4: memref<128x384xbf16, #tpu.memory_space<vmem>>, %arg5: memref<1x384xf32, #tpu.memory_space<vmem>>, %arg6: memref<1x384xf32, #tpu.memory_space<vmem>>, %arg7: memref<8x128xbf16, #tpu.memory_space<vmem>>) attributes {dimension_semantics = [#tpu.dimension_semantics<parallel>], iteration_bounds = array<i64: 1>, scalar_prefetch = 0 : i64, scratch_operands = 0 : i64, tpu.core_type = #tpu.core_type<tc>, window_params = [{transform_indices = @transform_0, window_bounds = array<i64: 8, 64>}, {transform_indices = @transform_1, window_bounds = array<i64: 8, 128>}, {pipeline_mode = #tpu.pipeline_mode<synchronous>, transform_indices = @transform_2, window_bounds = array<i64: 64, 384>}, {pipeline_mode = #tpu.pipeline_mode<synchronous>, transform_indices = @transform_3, window_bounds = array<i64: 128, 384>}, {pipeline_mode = #tpu.pipeline_mode<synchronous>, transform_indices = @transform_4, window_bounds = array<i64: 1, 384>}, {pipeline_mode = #tpu.pipeline_mode<synchronous>, transform_indices = @transform_5, window_bounds = array<i64: 1, 384>}, {transform_indices = @transform_6, window_bounds = array<i64: 8, 128>}]} {
    %c0 = arith.constant 0 : index
    %c0_0 = arith.constant 0 : index
    %0 = vector.load %arg2[%c0, %c0_0] : memref<8x128xbf16, #tpu.memory_space<vmem>>, vector<8x128xbf16>
    %c0_1 = arith.constant 0 : index
    %c0_2 = arith.constant 0 : index
    %1 = vector.load %arg1[%c0_1, %c0_2] : memref<8x64xbf16, #tpu.memory_space<vmem>>, vector<8x64xbf16>
    %c0_3 = arith.constant 0 : index
    %c0_4 = arith.constant 0 : index
    %2 = vector.load %arg3[%c0_3, %c0_4] : memref<64x384xbf16, #tpu.memory_space<vmem>>, vector<64x384xbf16>
    %cst = arith.constant dense<0.000000e+00> : vector<8x384xf32>
    %3 = tpu.matmul %1, %2, %cst {dimension_numbers = #tpu.dot_dimension_numbers<[1], [0], [0], [1], [0, 0, 1, 1], [], []>} : vector<8x64xbf16>, vector<64x384xbf16>, vector<8x384xf32> -> vector<8x384xf32>
    %c0_5 = arith.constant 0 : index
    %c0_6 = arith.constant 0 : index
    %4 = vector.load %arg4[%c0_5, %c0_6] : memref<128x384xbf16, #tpu.memory_space<vmem>>, vector<128x384xbf16>
    %cst_7 = arith.constant dense<0.000000e+00> : vector<8x384xf32>
    %5 = tpu.matmul %0, %4, %cst_7 {dimension_numbers = #tpu.dot_dimension_numbers<[1], [0], [0], [1], [0, 0, 1, 1], [], []>} : vector<8x128xbf16>, vector<128x384xbf16>, vector<8x384xf32> -> vector<8x384xf32>
    %6 = arith.addf %3, %5 : vector<8x384xf32>
    %c0_8 = arith.constant 0 : index
    %c0_9 = arith.constant 0 : index
    %7 = vector.load %arg5[%c0_8, %c0_9] : memref<1x384xf32, #tpu.memory_space<vmem>>, vector<1x384xf32>
    %c0_10 = arith.constant 0 : index
    %c0_11 = arith.constant 0 : index
    %8 = vector.load %arg6[%c0_10, %c0_11] : memref<1x384xf32, #tpu.memory_space<vmem>>, vector<1x384xf32>
    %cst_12 = arith.constant dense<0.000000e+00> : vector<8xf32>
    %9 = vector.multi_reduction <add>, %6, %cst_12 [1] : vector<8x384xf32> to vector<8xf32>
    %10 = vector.shape_cast %9 : vector<8xf32> to vector<8x1xf32>
    %cst_13 = arith.constant 0.00260416674 : f32
    %11 = vector.broadcast %cst_13 : f32 to vector<8x1xf32>
    %12 = arith.mulf %10, %11 : vector<8x1xf32>
    %13 = arith.mulf %6, %6 : vector<8x384xf32>
    %cst_14 = arith.constant dense<0.000000e+00> : vector<8xf32>
    %14 = vector.multi_reduction <add>, %13, %cst_14 [1] : vector<8x384xf32> to vector<8xf32>
    %15 = vector.shape_cast %14 : vector<8xf32> to vector<8x1xf32>
    %cst_15 = arith.constant 0.00260416674 : f32
    %16 = vector.broadcast %cst_15 : f32 to vector<8x1xf32>
    %17 = arith.mulf %15, %16 : vector<8x1xf32>
    %18 = arith.mulf %12, %12 : vector<8x1xf32>
    %19 = arith.subf %17, %18 : vector<8x1xf32>
    %cst_16 = arith.constant 1.000000e-03 : f32
    %20 = vector.broadcast %cst_16 : f32 to vector<8x1xf32>
    %21 = arith.addf %19, %20 : vector<8x1xf32>
    %22 = math.rsqrt %21 : vector<8x1xf32>
    %23 = vector.broadcast %22 : vector<8x1xf32> to vector<8x384xf32>
    %24 = vector.broadcast %7 : vector<1x384xf32> to vector<8x384xf32>
    %25 = arith.mulf %23, %24 : vector<8x384xf32>
    %26 = arith.mulf %6, %25 : vector<8x384xf32>
    %27 = vector.broadcast %12 : vector<8x1xf32> to vector<8x384xf32>
    %28 = arith.mulf %27, %25 : vector<8x384xf32>
    %29 = vector.broadcast %8 : vector<1x384xf32> to vector<8x384xf32>
    %30 = arith.subf %29, %28 : vector<8x384xf32>
    %31 = arith.addf %26, %30 : vector<8x384xf32>
    %32 = arith.truncf %31 : vector<8x384xf32> to vector<8x384xbf16>
    %33 = vector.extract_strided_slice %32 {offsets = [0, 0], sizes = [8, 128], strides = [1, 1]} : vector<8x384xbf16> to vector<8x128xbf16>
    %34 = arith.negf %33 : vector<8x128xbf16>
    %35 = math.exp %34 : vector<8x128xbf16>
    %cst_17 = arith.constant 1.000000e+00 : bf16
    %36 = vector.broadcast %cst_17 : bf16 to vector<8x128xbf16>
    %37 = arith.addf %36, %35 : vector<8x128xbf16>
    %38 = arith.divf %36, %37 : vector<8x128xbf16>
    %39 = vector.extract_strided_slice %32 {offsets = [0, 128], sizes = [8, 128], strides = [1, 1]} : vector<8x384xbf16> to vector<8x128xbf16>
    %40 = arith.mulf %38, %39 : vector<8x128xbf16>
    %41 = math.tanh %40 : vector<8x128xbf16>
    %42 = vector.extract_strided_slice %32 {offsets = [0, 256], sizes = [8, 128], strides = [1, 1]} : vector<8x384xbf16> to vector<8x128xbf16>
    %cst_18 = arith.constant -1.000000e+00 : bf16
    %43 = vector.broadcast %cst_18 : bf16 to vector<8x128xbf16>
    %44 = arith.addf %42, %43 : vector<8x128xbf16>
    %45 = arith.negf %44 : vector<8x128xbf16>
    %46 = math.exp %45 : vector<8x128xbf16>
    %cst_19 = arith.constant 1.000000e+00 : bf16
    %47 = vector.broadcast %cst_19 : bf16 to vector<8x128xbf16>
    %48 = arith.addf %47, %46 : vector<8x128xbf16>
    %49 = arith.divf %47, %48 : vector<8x128xbf16>
    %50 = arith.mulf %49, %41 : vector<8x128xbf16>
    %cst_20 = arith.constant 1.000000e+00 : bf16
    %51 = vector.broadcast %cst_20 : bf16 to vector<8x128xbf16>
    %52 = arith.subf %51, %49 : vector<8x128xbf16>
    %53 = arith.mulf %52, %0 : vector<8x128xbf16>
    %54 = arith.addf %50, %53 : vector<8x128xbf16>
    %c0_21 = arith.constant 0 : index
    %c0_22 = arith.constant 0 : index
    %55 = vector.load %arg7[%c0_21, %c0_22] : memref<8x128xbf16, #tpu.memory_space<vmem>>, vector<8x128xbf16>
    tpu.vector_store %arg7[%c0_21, %c0_22], %54 {strides = array<i32>} : memref<8x128xbf16, #tpu.memory_space<vmem>>, vector<8x128xbf16>,
    return
  }
  func.func @transform_0(%arg0: i32) -> (i32, i32) {
    %c0_i32 = arith.constant 0 : i32
    %c0_i32_0 = arith.constant 0 : i32
    return %arg0, %c0_i32 : i32, i32
  }
  func.func @transform_1(%arg0: i32) -> (i32, i32) {
    %c0_i32 = arith.constant 0 : i32
    %c0_i32_0 = arith.constant 0 : i32
    return %arg0, %c0_i32 : i32, i32
  }
  func.func @transform_2(%arg0: i32) -> (i32, i32) {
    %c0_i32 = arith.constant 0 : i32
    %c0_i32_0 = arith.constant 0 : i32
    %c0_i32_1 = arith.constant 0 : i32
    return %c0_i32, %c0_i32_0 : i32, i32
  }
  func.func @transform_3(%arg0: i32) -> (i32, i32) {
    %c0_i32 = arith.constant 0 : i32
    %c0_i32_0 = arith.constant 0 : i32
    %c0_i32_1 = arith.constant 0 : i32
    return %c0_i32, %c0_i32_0 : i32, i32
  }
  func.func @transform_4(%arg0: i32) -> (i32, i32) {
    %c0_i32 = arith.constant 0 : i32
    %c0_i32_0 = arith.constant 0 : i32
    %c0_i32_1 = arith.constant 0 : i32
    return %c0_i32, %c0_i32_0 : i32, i32
  }
  func.func @transform_5(%arg0: i32) -> (i32, i32) {
    %c0_i32 = arith.constant 0 : i32
    %c0_i32_0 = arith.constant 0 : i32
    %c0_i32_1 = arith.constant 0 : i32
    return %c0_i32, %c0_i32_0 : i32, i32
  }
  func.func @transform_6(%arg0: i32) -> (i32, i32) {
    %c0_i32 = arith.constant 0 : i32
    %c0_i32_0 = arith.constant 0 : i32
    return %arg0, %c0_i32 : i32, i32
  }
}

</mosaic_0001>

<llo_original>
// kernel: _lambda_.1
$region0: #{_lambda_.1}
  #allocation0 [shape = 'u32[]', space=smem, size = 0x4, offset = 0x4, fixed_abs, tag = 'smem constant byte address 0x4 - core index']
  #allocation1 [shape = 'u32[72,128]{1,0:T(1,128)}', space=vmem, size = 0x9000, scoped, tag = 'internal scratch']
  %s0 = inlined_call_operand.vmem [shape: bf16[8,64], index: 0, kind: input, shape index: {}]
  %s1 = inlined_call_operand.vmem [shape: bf16[8,128], index: 1, kind: input, shape index: {}]
  %s2 = inlined_call_operand.hbm [shape: bf16[64,384], index: 2, kind: input, shape index: {}]
  %s3 = inlined_call_operand.hbm [shape: bf16[128,384], index: 3, kind: input, shape index: {}]
  %s4 = inlined_call_operand.vmem [shape: f32[1,384], index: 4, kind: input, shape index: {}]
  %s5 = inlined_call_operand.vmem [shape: f32[1,384], index: 5, kind: input, shape index: {}]
  %s6 = inlined_call_operand.vmem [shape: bf16[8,128], index: 6, kind: output, shape index: {}]
  %s7 = sld [smem:[#allocation0]]
  $region42: #{_lambda_.1} parent=0
    _
  %s9 = ssub.s32 1, %s7
  %s10 = scalar_select 0, %s9, %s7
  $region1: #{_lambda_.1} parent=0
    #allocation2 [shape = 'u8[49152]{0}', space=vmem, size = 0xc000, scoped, tag = 'input window, operand 2, single buffered']
    #allocation3 [shape = 's32[1]{0}', space=sflag, size = 0x4, scoped, tag = 'scoped memory for _lambda_.1']
    #allocation4 [shape = 'u8[98304]{0}', space=vmem, size = 0x18000, scoped, tag = 'input window, operand 3, single buffered']
    #allocation5 [shape = 's32[1]{0}', space=sflag, size = 0x4, scoped, tag = 'scoped memory for _lambda_.1']
    %11 = vsyncpa [#allocation3], 0
    %12 = vsyncpa [#allocation5], 0
    // Predicated region
    $region2: #{_lambda_.1} parent=1 // pred_check
      _
    $region3: #{_lambda_.1} parent=1 // pred_check_branch
      %14 = sbr.rel (0) target = $region5
    $region4: #{_lambda_.1} parent=1 // pred_region
      _
    $region5: #{_lambda_.1} parent=1 // pred_fallthru
      _
    // Predicated region
    $region6: #{_lambda_.1} parent=1 // pred_check
      _
    $region7: #{_lambda_.1} parent=1 // pred_check_branch
      %16 = sbr.rel (0) target = $region9
    $region8: #{_lambda_.1} parent=1 // pred_region
      _
    $region9: #{_lambda_.1} parent=1 // pred_fallthru
      _
    // Predicated region
    $region10: #{_lambda_.1} parent=1 // pred_check
      _
    $region11: #{_lambda_.1} parent=1 // pred_check_branch
      %18 = sbr.rel (0) target = $region13
    $region12: #{_lambda_.1} parent=1 // pred_region
      %20 = vsyncadd [#allocation3], 0
      %s21 = sshll.u32 %s2, 4
      %s22 = int_to_ptr.hbm [resolvable:$true] %s21
      %s23 = sshll.u32 [#allocation2], 4
      %s24 = int_to_ptr.vmem [resolvable:$true] %s23
      %29 = dma.hbm_to_vmem [thread:$0]  %s22, 1536, %s24, [#allocation3], 192, 192, 12
    $region13: #{_lambda_.1} parent=1 // pred_fallthru
      _
    // Predicated region
    $region14: #{_lambda_.1} parent=1 // pred_check
      _
    $region15: #{_lambda_.1} parent=1 // pred_check_branch
      %31 = sbr.rel (0) target = $region17
    $region16: #{_lambda_.1} parent=1 // pred_region
      %33 = vsyncadd [#allocation5], 0
      %s34 = sshll.u32 %s3, 4
      %s35 = int_to_ptr.hbm [resolvable:$true] %s34
      %s36 = sshll.u32 [#allocation4], 4
      %s37 = int_to_ptr.vmem [resolvable:$true] %s36
      %42 = dma.hbm_to_vmem [thread:$0]  %s35, 3072, %s37, [#allocation5], 192, 192, 12
    $region17: #{_lambda_.1} parent=1 // pred_fallthru
      _
    // Predicated region
    $region18: #{_lambda_.1} parent=1 // pred_check
      _
    $region19: #{_lambda_.1} parent=1 // pred_check_branch
      %44 = sbr.rel (0) target = $region21
    $region20: #{_lambda_.1} parent=1 // pred_region
      _
    $region21: #{_lambda_.1} parent=1 // pred_fallthru
      _
    // Predicated region
    $region22: #{_lambda_.1} parent=1 // pred_check
      _
    $region23: #{_lambda_.1} parent=1 // pred_check_branch
      %46 = sbr.rel (0) target = $region25
    $region24: #{_lambda_.1} parent=1 // pred_region
      _
    $region25: #{_lambda_.1} parent=1 // pred_fallthru
      _
    // Predicated region
    $region26: #{_lambda_.1} parent=1 // pred_check
      _
    $region27: #{_lambda_.1} parent=1 // pred_check_branch
      %48 = sbr.rel (0) target = $region29
    $region28: #{_lambda_.1} parent=1 // pred_region
      %50 = dma.done [#allocation3], 1536
    $region29: #{_lambda_.1} parent=1 // pred_fallthru
      _
    // Predicated region
    $region30: #{_lambda_.1} parent=1 // pred_check
      _
    $region31: #{_lambda_.1} parent=1 // pred_check_branch
      %52 = sbr.rel (0) target = $region33
    $region32: #{_lambda_.1} parent=1 // pred_region
      %54 = dma.done [#allocation5], 3072
    $region33: #{_lambda_.1} parent=1 // pred_fallthru
      _
    %v57 = vld [vmem:[%s1] sm:$0xf]
    %v58 = vld [vmem:[%s0] sm:$0xf]
    %v59 = vld [vmem:[#allocation2] sm:$0xff]
    %v60 = vld [vmem:[#allocation2 + $0x8] sm:$0xf]
    %v61 = vld [vmem:[#allocation2 + $0xc] sm:$0xff]
    %v62 = vld [vmem:[#allocation2 + $0x14] sm:$0xf]
    %v63 = vld [vmem:[#allocation2 + $0x18] sm:$0xff]
    %v64 = vld [vmem:[#allocation2 + $0x20] sm:$0xf]
    %v65 = vld [vmem:[#allocation2 + $0x24] sm:$0xff]
    %v66 = vld [vmem:[#allocation2 + $0x2c] sm:$0xf]
    %v67 = vld [vmem:[#allocation2 + $0x30] sm:$0xff]
    %v68 = vld [vmem:[#allocation2 + $0x38] sm:$0xf]
    %v69 = vld [vmem:[#allocation2 + $0x3c] sm:$0xff]
    %v70 = vld [vmem:[#allocation2 + $0x44] sm:$0xf]
    %v71 = vld [vmem:[#allocation2 + $0x48] sm:$0xff]
    %v72 = vld [vmem:[#allocation2 + $0x50] sm:$0xf]
    %v73 = vld [vmem:[#allocation2 + $0x54] sm:$0xff]
    %v74 = vld [vmem:[#allocation2 + $0x5c] sm:$0xf]
    %v75 = vld [vmem:[#allocation4] sm:$0xff]
    %v76 = vld [vmem:[#allocation4 + $0x8] sm:$0xf]
    %v77 = vld [vmem:[#allocation4 + $0xc] sm:$0xff]
    %v78 = vld [vmem:[#allocation4 + $0x14] sm:$0xf]
    %v79 = vld [vmem:[#allocation4 + $0x18] sm:$0xff]
    %v80 = vld [vmem:[#allocation4 + $0x20] sm:$0xf]
    %v81 = vld [vmem:[#allocation4 + $0x24] sm:$0xff]
    %v82 = vld [vmem:[#allocation4 + $0x2c] sm:$0xf]
    %v83 = vld [vmem:[#allocation4 + $0x30] sm:$0xff]
    %v84 = vld [vmem:[#allocation4 + $0x38] sm:$0xf]
    %v85 = vld [vmem:[#allocation4 + $0x3c] sm:$0xff]
    %v86 = vld [vmem:[#allocation4 + $0x44] sm:$0xf]
    %v87 = vld [vmem:[#allocation4 + $0x48] sm:$0xff]
    %v88 = vld [vmem:[#allocation4 + $0x50] sm:$0xf]
    %v89 = vld [vmem:[#allocation4 + $0x54] sm:$0xff]
    %v90 = vld [vmem:[#allocation4 + $0x5c] sm:$0xf]
    %v91 = vld [vmem:[#allocation4 + $0x60] sm:$0xff]
    %v92 = vld [vmem:[#allocation4 + $0x68] sm:$0xf]
    %v93 = vld [vmem:[#allocation4 + $0x6c] sm:$0xff]
    %v94 = vld [vmem:[#allocation4 + $0x74] sm:$0xf]
    %v95 = vld [vmem:[#allocation4 + $0x78] sm:$0xff]
    %v96 = vld [vmem:[#allocation4 + $0x80] sm:$0xf]
    %v97 = vld [vmem:[#allocation4 + $0x84] sm:$0xff]
    %v98 = vld [vmem:[#allocation4 + $0x8c] sm:$0xf]
    %v99 = vld [vmem:[#allocation4 + $0x90] sm:$0xff]
    %v100 = vld [vmem:[#allocation4 + $0x98] sm:$0xf]
    %v101 = vld [vmem:[#allocation4 + $0x9c] sm:$0xff]
    %v102 = vld [vmem:[#allocation4 + $0xa4] sm:$0xf]
    %v103 = vld [vmem:[#allocation4 + $0xa8] sm:$0xff]
    %v104 = vld [vmem:[#allocation4 + $0xb0] sm:$0xf]
    %v105 = vld [vmem:[#allocation4 + $0xb4] sm:$0xff]
    %v106 = vld [vmem:[#allocation4 + $0xbc] sm:$0xf]
    %v139 = vunpack.c.l.b16 %v75
    %v140 = vunpack.c.h.b16 %v75
    %v141 = vunpack.c.l.b16 %v76
    %v142 = vunpack.c.l.b16 %v77
    %v143 = vunpack.c.h.b16 %v77
    %v144 = vunpack.c.l.b16 %v78
    %v145 = vunpack.c.l.b16 %v79
    %v146 = vunpack.c.h.b16 %v79
    %v147 = vunpack.c.l.b16 %v80
    %v148 = vunpack.c.l.b16 %v81
    %v149 = vunpack.c.h.b16 %v81
    %v150 = vunpack.c.l.b16 %v82
    %v151 = vunpack.c.l.b16 %v83
    %v152 = vunpack.c.h.b16 %v83
    %v153 = vunpack.c.l.b16 %v84
    %v154 = vunpack.c.l.b16 %v85
    %v155 = vunpack.c.h.b16 %v85
    %v156 = vunpack.c.l.b16 %v86
    %v157 = vunpack.c.l.b16 %v87
    %v158 = vunpack.c.h.b16 %v87
    %v159 = vunpack.c.l.b16 %v88
    %v160 = vunpack.c.l.b16 %v89
    %v161 = vunpack.c.h.b16 %v89
    %v162 = vunpack.c.l.b16 %v90
    %v163 = vunpack.c.l.b16 %v91
    %v164 = vunpack.c.h.b16 %v91
    %v165 = vunpack.c.l.b16 %v92
    %v166 = vunpack.c.l.b16 %v93
    %v167 = vunpack.c.h.b16 %v93
    %v168 = vunpack.c.l.b16 %v94
    %v169 = vunpack.c.l.b16 %v95
    %v170 = vunpack.c.h.b16 %v95
    %v171 = vunpack.c.l.b16 %v96
    %v172 = vunpack.c.l.b16 %v97
    %v173 = vunpack.c.h.b16 %v97
    %v174 = vunpack.c.l.b16 %v98
    %v175 = vunpack.c.l.b16 %v99
    %v176 = vunpack.c.h.b16 %v99
    %v177 = vunpack.c.l.b16 %v100
    %v178 = vunpack.c.l.b16 %v101
    %v179 = vunpack.c.h.b16 %v101
    %v180 = vunpack.c.l.b16 %v102
    %v181 = vunpack.c.l.b16 %v103
    %v182 = vunpack.c.h.b16 %v103
    %v183 = vunpack.c.l.b16 %v104
    %v184 = vunpack.c.l.b16 %v105
    %v185 = vunpack.c.h.b16 %v105
    %v186 = vunpack.c.l.b16 %v106
    %v187 = vpack.c.b16 %v142, %v139
    %v188 = vpack.c.b16 %v143, %v140
    %v189 = vpack.c.b16 %v144, %v141
    %v190 = vpack.c.b16 %v148, %v145
    %v191 = vpack.c.b16 %v149, %v146
    %v192 = vpack.c.b16 %v150, %v147
    %v193 = vpack.c.b16 %v154, %v151
    %v194 = vpack.c.b16 %v155, %v152
    %v195 = vpack.c.b16 %v156, %v153
    %v196 = vpack.c.b16 %v160, %v157
    %v197 = vpack.c.b16 %v161, %v158
    %v198 = vpack.c.b16 %v162, %v159
    %v199 = vpack.c.b16 %v166, %v163
    %v200 = vpack.c.b16 %v167, %v164
    %v201 = vpack.c.b16 %v168, %v165
    %v202 = vpack.c.b16 %v172, %v169
    %v203 = vpack.c.b16 %v173, %v170
    %v204 = vpack.c.b16 %v174, %v171
    %v205 = vpack.c.b16 %v178, %v175
    %v206 = vpack.c.b16 %v179, %v176
    %v207 = vpack.c.b16 %v180, %v177
    %v208 = vpack.c.b16 %v184, %v181
    %v209 = vpack.c.b16 %v185, %v182
    %v210 = vpack.c.b16 %v186, %v183
    %235 = vmatpush.bf16.msra.mxu0 %v208
    %236 = vmatpush.bf16.msra.mxu0 %v205
    %237 = vmatpush.bf16.msra.mxu0 %v202
    %238 = vmatpush.bf16.msra.mxu0 %v199
    %239 = vmatpush.bf16.msra.mxu0 %v196
    %240 = vmatpush.bf16.msra.mxu0 %v193
    %241 = vmatpush.bf16.msra.mxu0 %v190
    %242 = vmatpush.bf16.msra.mxu0 %v187
    %243 = vmatmul.bf16.gmra.mxu0 %v57
    %v244 = vpop.f32.mrf.mxu0
    %v245 = vadd.f32 0.0, %v244
    %v246 = vpop.f32.mrf.mxu0
    %247 = vdwg.mxu0
    %248 = vmatpush.bf16.msra.mxu0 %v209
    %249 = vmatpush.bf16.msra.mxu0 %v206
    %250 = vmatpush.bf16.msra.mxu0 %v203
    %251 = vmatpush.bf16.msra.mxu0 %v200
    %252 = vmatpush.bf16.msra.mxu0 %v197
    %253 = vmatpush.bf16.msra.mxu0 %v194
    %254 = vmatpush.bf16.msra.mxu0 %v191
    %255 = vmatpush.bf16.msra.mxu0 %v188
    %256 = vmatmul.bf16.gmra.mxu0 %v57
    %v257 = vpop.f32.mrf.mxu0
    %v258 = vadd.f32 0.0, %v257
    %v259 = vpop.f32.mrf.mxu0
    %260 = vdwg.mxu0
    %261 = vmatpush.bf16.msra.mxu0 %v210
    %262 = vmatpush.bf16.msra.mxu0 %v207
    %263 = vmatpush.bf16.msra.mxu0 %v204
    %264 = vmatpush.bf16.msra.mxu0 %v201
    %265 = vmatpush.bf16.msra.mxu0 %v198
    %266 = vmatpush.bf16.msra.mxu0 %v195
    %267 = vmatpush.bf16.msra.mxu0 %v192
    %268 = vmatpush.bf16.msra.mxu0 %v189
    %269 = vmatmul.bf16.gmra.mxu0 %v57
    %v270 = vpop.f32.mrf.mxu0
    %v271 = vadd.f32 0.0, %v270
    %v272 = vpop.f32.mrf.mxu0
    %273 = vdwg.mxu0
    %v290 = vunpack.c.l.b16 %v59
    %v291 = vunpack.c.h.b16 %v59
    %v292 = vunpack.c.l.b16 %v60
    %v293 = vunpack.c.l.b16 %v61
    %v294 = vunpack.c.h.b16 %v61
    %v295 = vunpack.c.l.b16 %v62
    %v296 = vunpack.c.l.b16 %v63
    %v297 = vunpack.c.h.b16 %v63
    %v298 = vunpack.c.l.b16 %v64
    %v299 = vunpack.c.l.b16 %v65
    %v300 = vunpack.c.h.b16 %v65
    %v301 = vunpack.c.l.b16 %v66
    %v302 = vunpack.c.l.b16 %v67
    %v303 = vunpack.c.h.b16 %v67
    %v304 = vunpack.c.l.b16 %v68
    %v305 = vunpack.c.l.b16 %v69
    %v306 = vunpack.c.h.b16 %v69
    %v307 = vunpack.c.l.b16 %v70
    %v308 = vunpack.c.l.b16 %v71
    %v309 = vunpack.c.h.b16 %v71
    %v310 = vunpack.c.l.b16 %v72
    %v311 = vunpack.c.l.b16 %v73
    %v312 = vunpack.c.h.b16 %v73
    %v313 = vunpack.c.l.b16 %v74
    %v314 = vpack.c.b16 %v293, %v290
    %v315 = vpack.c.b16 %v294, %v291
    %v316 = vpack.c.b16 %v295, %v292
    %v317 = vpack.c.b16 %v299, %v296
    %v318 = vpack.c.b16 %v300, %v297
    %v319 = vpack.c.b16 %v301, %v298
    %v320 = vpack.c.b16 %v305, %v302
    %v321 = vpack.c.b16 %v306, %v303
    %v322 = vpack.c.b16 %v307, %v304
    %v323 = vpack.c.b16 %v311, %v308
    %v324 = vpack.c.b16 %v312, %v309
    %v325 = vpack.c.b16 %v313, %v310
    %vm338 = vcmask 523264
    %v340 = vsel %vm338, %v58, 0
    %342 = vmatpush.bf16.msra.mxu0 0
    %343 = vmatpush.bf16.msra.mxu0 0
    %344 = vmatpush.bf16.msra.mxu0 0
    %345 = vmatpush.bf16.msra.mxu0 0
    %346 = vmatpush.bf16.msra.mxu0 %v323
    %347 = vmatpush.bf16.msra.mxu0 %v320
    %348 = vmatpush.bf16.msra.mxu0 %v317
    %349 = vmatpush.bf16.msra.mxu0 %v314
    %350 = vmatmul.bf16.gmra.mxu0 %v340
    %v351 = vpop.f32.mrf.mxu0
    %v352 = vadd.f32 %v245, %v351
    %v353 = vpop.f32.mrf.mxu0
    %354 = vdwg.mxu0
    %355 = vmatpush.bf16.msra.mxu0 0
    %356 = vmatpush.bf16.msra.mxu0 0
    %357 = vmatpush.bf16.msra.mxu0 0
    %358 = vmatpush.bf16.msra.mxu0 0
    %359 = vmatpush.bf16.msra.mxu0 %v324
    %360 = vmatpush.bf16.msra.mxu0 %v321
    %361 = vmatpush.bf16.msra.mxu0 %v318
    %362 = vmatpush.bf16.msra.mxu0 %v315
    %363 = vmatmul.bf16.gmra.mxu0 %v340
    %v364 = vpop.f32.mrf.mxu0
    %v365 = vadd.f32 %v258, %v364
    %v366 = vpop.f32.mrf.mxu0
    %367 = vdwg.mxu0
    %368 = vmatpush.bf16.msra.mxu0 0
    %369 = vmatpush.bf16.msra.mxu0 0
    %370 = vmatpush.bf16.msra.mxu0 0
    %371 = vmatpush.bf16.msra.mxu0 0
    %372 = vmatpush.bf16.msra.mxu0 %v325
    %373 = vmatpush.bf16.msra.mxu0 %v322
    %374 = vmatpush.bf16.msra.mxu0 %v319
    %375 = vmatpush.bf16.msra.mxu0 %v316
    %376 = vmatmul.bf16.gmra.mxu0 %v340
    %v377 = vpop.f32.mrf.mxu0
    %v378 = vadd.f32 %v271, %v377
    %v379 = vpop.f32.mrf.mxu0
    %380 = vdwg.mxu0
    %v381 = vld [vmem:[%s4] sm:$0x7]
    %v382 = vld [vmem:[%s5] sm:$0x7]
    %v383 = vadd.f32 %v352, %v365
    %v384 = vadd.f32 %v383, %v378
    %385 = vadd.xlane.f32.xlu0 %v384
    %v386 = vpop.xlane.xlu0 %385
    %v387 = vmul.f32 %v386, 0.0026041667
    %v388 = vmul.f32 %v352, %v352
    %v389 = vmul.f32 %v365, %v365
    %v390 = vmul.f32 %v378, %v378
    %v391 = vadd.f32 %v388, %v389
    %v392 = vadd.f32 %v391, %v390
    %393 = vadd.xlane.f32.xlu0 %v392
    %v394 = vpop.xlane.xlu0 %393
    %v395 = vmul.f32 %v394, 0.0026041667
    %v396 = vmul.f32 %v387, %v387
    %v397 = vsub.f32 %v395, %v396
    %v398 = vadd.f32 %v397, 0.001
    %v399 = vrsqrt.pop %v398
    %v400 = vmul.f32 %v399, %v398
    %v401 = vmul.f32 %v400, %v399
    %v402 = vmul.f32 0.5, %v401
    %v403 = vsub.f32 1.5, %v402
    %v404 = vmul.f32 %v399, %v403
    %vm405 = vweird.f32 %v398
    %vm406 = vweird.f32 %v399
    %vm407 = vmor %vm405, %vm406
    %v408 = vsel %vm407, %v399, %v404
    %v410 = vperm.slane %v381, 0
    %v411 = vperm.slane %v381, 1
    %v412 = vperm.slane %v381, 2
    %v416 = vmul.f32 %v408, %v410
    %v417 = vmul.f32 %v408, %v411
    %v418 = vmul.f32 %v408, %v412
    %v419 = vmul.f32 %v352, %v416
    %v420 = vmul.f32 %v365, %v417
    %v421 = vmul.f32 %v378, %v418
    %v422 = vmul.f32 %v387, %v416
    %v423 = vmul.f32 %v387, %v417
    %v424 = vmul.f32 %v387, %v418
    %v426 = vperm.slane %v382, 0
    %v427 = vperm.slane %v382, 1
    %v428 = vperm.slane %v382, 2
    %v432 = vsub.f32 %v426, %v422
    %v433 = vsub.f32 %v427, %v423
    %v434 = vsub.f32 %v428, %v424
    %v435 = vadd.f32 %v419, %v432
    %v436 = vadd.f32 %v420, %v433
    %v437 = vadd.f32 %v421, %v434
    %v438 = vpack.c.bf16 %v436, %v435
    %v439 = vpack.c.bf16 %v437, %v437
    %v440 = vxor.u32 %v438, 2147516416
    %v441 = vunpack.c.l.bf16 %v440
    %v442 = vmul.f32 %v441, 1.442695
    %v443 = vpow.pop %v442
    %v444 = vpack.c.bf16 %v443, %v443
    %v445 = vunpack.c.l.bf16 %v444
    %v446 = vadd.f32 %v445, 1.0
    %v447 = vpack.c.bf16 %v446, %v446
    %v448 = vunpack.c.h.bf16 1065369472
    %v449 = vunpack.c.l.bf16 1065369472
    %v450 = vunpack.c.h.bf16 %v447
    %v451 = vunpack.c.l.bf16 %v447
    %v452 = vrcp.pop %v450
    %v453 = vmul.f32 %v448, %v452
    %v454 = vrcp.pop %v451
    %v455 = vmul.f32 %v449, %v454
    %v456 = vpack.c.bf16 %v453, %v455
    %v457 = vunpack.c.l.bf16 %v456
    %v459 = vrot.slane %v438, 4
    %v461 = vunpack.c.l.bf16 %v459
    %v462 = vmul.f32 %v457, %v461
    %v463 = vpack.c.bf16 %v462, %v462
    %v464 = vunpack.c.l.bf16 %v463
    %v465 = vtanh.pop %v464
    %v466 = vpack.c.bf16 %v465, %v465
    %v467 = vunpack.c.l.bf16 %v439
    %v468 = vadd.f32 %v467, -1.0
    %v469 = vpack.c.bf16 %v468, %v468
    %v470 = vxor.u32 %v469, 2147516416
    %v471 = vunpack.c.l.bf16 %v470
    %v472 = vmul.f32 %v471, 1.442695
    %v473 = vpow.pop %v472
    %v474 = vpack.c.bf16 %v473, %v473
    %v475 = vunpack.c.l.bf16 %v474
    %v476 = vadd.f32 %v475, 1.0
    %v477 = vpack.c.bf16 %v476, %v476
    %v478 = vunpack.c.h.bf16 %v477
    %v479 = vunpack.c.l.bf16 %v477
    %v480 = vrcp.pop %v478
    %v481 = vmul.f32 %v448, %v480
    %v482 = vrcp.pop %v479
    %v483 = vmul.f32 %v449, %v482
    %v484 = vpack.c.bf16 %v481, %v483
    %v485 = vunpack.c.l.bf16 %v484
    %v486 = vunpack.c.l.bf16 %v466
    %v487 = vmul.f32 %v485, %v486
    %v488 = vpack.c.bf16 %v487, %v487
    %v489 = vsub.f32 1.0, %v485
    %v490 = vpack.c.bf16 %v489, %v489
    %v491 = vunpack.c.l.bf16 %v490
    %v492 = vunpack.c.l.bf16 %v57
    %v493 = vmul.f32 %v491, %v492
    %v494 = vpack.c.bf16 %v493, %v493
    %v495 = vunpack.c.l.bf16 %v488
    %v496 = vunpack.c.l.bf16 %v494
    %v497 = vadd.f32 %v495, %v496
    %v498 = vpack.c.bf16 %v497, %v497
    %499 = vst [vmem:[%s6] sm:$0xf] %v498
    // Predicated region
    $region34: #{_lambda_.1} parent=1 // pred_check
      _
    $region35: #{_lambda_.1} parent=1 // pred_check_branch
      %501 = sbr.rel (0) target = $region37
    $region36: #{_lambda_.1} parent=1 // pred_region
      _
    $region37: #{_lambda_.1} parent=1 // pred_fallthru
      _
    // Predicated region
    $region38: #{_lambda_.1} parent=1 // pred_check
      _
    $region39: #{_lambda_.1} parent=1 // pred_check_branch
      %503 = sbr.rel (0) target = $region41
    $region40: #{_lambda_.1} parent=1 // pred_region
      _
    $region41: #{_lambda_.1} parent=1 // pred_fallthru
      _
    %504 = vsyncpa [#allocation3], 1
    %505 = vsyncpa [#allocation5], 1

</llo_original>
